<compile_context>
chip_gen: v7x
topology: tpu7x:2x2x1
jax: 0.10.0
libtpu: 0.0.40
codegen_flags: <defaults>
</compile_context>

<pallas_src>
import functools

import jax
import jax.numpy as jnp
from jax.experimental import pallas as pl
from jax.experimental.pallas import tpu as pltpu

LANES = 128
SUBGROUP = 32                   # row granularity (multiple of 8 f32 / 16 bf16 sublanes)
DEFAULT_ROWS_PER_TILE = 4096    # 4096 x 128 f32 = 2 MiB / block; sweep 2048-8192
SMALL_N_FAST_PATH = 65536       # below this, pure-jnp is faster than a kernel launch


def _edge_sparsity_kernel(w_ref, o_ref, *, threshold, valid_rows_last,
                          num_row_tiles, use_alpha, use_gamma):
    """One grid step: fold a (tile_rows, 128) tile into the resident
    (3, 8, 128) partial-sum block.

    Row 0: sum |w|          (unscaled)
    Row 1: sum log(w+1e-6)  (unscaled)
    Row 2: sum w^2 [w<thr]  (unscaled)
    """
    j = pl.program_id(0)

    @pl.when(j == 0)
    def _():
        o_ref[...] = jnp.zeros_like(o_ref)

    def accumulate(valid_rows):
        w = w_ref[...].astype(jnp.float32)

        if valid_rows is None:
            valid = None
        else:
            row = jax.lax.broadcasted_iota(jnp.int32, w.shape, 0)
            valid = row < valid_rows

        def fold(term, idx):
            # Mask out the (stale / garbage) rows of a partial last block.
            if valid is not None:
                term = jnp.where(valid, term, jnp.float32(0.0))
            # VALU-only partial reduce: groups of 8 rows -> (8, 128) slab; the
            # cross-lane reduce of the tiny (3,8,128) buffer happens once, in
            # the wrapper.
            o_ref[idx, :, :] += jnp.sum(term.reshape(-1, 8, LANES), axis=0)

        if use_alpha:
            fold(jnp.abs(w), 0)
        # Always compute the log term (preserves NaN for w <= -1e-6 even if
        # beta == 0, matching the PyTorch reference 0 * NaN behaviour).
        fold(jnp.log(w + jnp.float32(1e-6)), 1)
        if use_gamma:
            fold(jnp.where(w < jnp.float32(threshold), w * w, jnp.float32(0.0)), 2)

    if valid_rows_last is None:
        # Every block is full: single clean hot path, no masking anywhere.
        accumulate(None)
    else:
        if num_row_tiles > 1:
            @pl.when(j < num_row_tiles - 1)
            def _():
                accumulate(None)

        @pl.when(j == num_row_tiles - 1)
        def _():
            accumulate(valid_rows_last)


def _edge_sparsity_jnp(w_f32, alpha, beta, gamma, threshold):
    """XLA-fused path (small inputs / ragged tail)."""
    sparsity = alpha * jnp.sum(jnp.abs(w_f32))
    amplification = -beta * jnp.sum(jnp.log(w_f32 + jnp.float32(1e-6)))
    penalty = gamma * jnp.sum(
        jnp.where(w_f32 < jnp.float32(threshold), w_f32 * w_f32, jnp.float32(0.0)))
    return sparsity + amplification + penalty


def edge_sparsity_loss(edge_weights, alpha=1.0, beta=1.0, gamma=5.0,
                       threshold=0.1, rows_per_tile=DEFAULT_ROWS_PER_TILE,
                       min_pallas_elems=SMALL_N_FAST_PATH):
    """Pallas-TPU implementation of EdgeSparsityLoss.forward."""
    w = jnp.asarray(edge_weights)
    if w.dtype != jnp.bfloat16:
        w = w.astype(jnp.float32)   # stream bf16 as-is (half HBM bytes); else f32
    w = w.reshape(-1)
    n = w.shape[0]
    if n == 0:
        return jnp.float32(0.0)

    # Small-n fast path: launch overhead + separate partial reduce dominates.
    if n < min_pallas_elems:
        return _edge_sparsity_jnp(w.astype(jnp.float32), alpha, beta, gamma, threshold)

    # ----- split into a 128-aligned main slab + a tiny (<128 elem) tail -----
    n_main = (n // LANES) * LANES
    if n_main == 0:
        return _edge_sparsity_jnp(w.astype(jnp.float32), alpha, beta, gamma, threshold)

    tail_total = jnp.float32(0.0)
    if n_main < n:
        tail = w[n_main:].astype(jnp.float32)           # < 128 elements, plain jnp
        tail_total = _edge_sparsity_jnp(tail, alpha, beta, gamma, threshold)
        # TODO(synk): for non-128-aligned inputs this prefix slice may still
        # materialize one copy in XLA; 128-aligned inputs are fully zero-copy.
        w_main = w[:n_main]
    else:
        w_main = w

    rows = n_main // LANES
    w2d = w_main.reshape(rows, LANES)                    # free bitcast

    # ----- tiling -----
    rpt = max(SUBGROUP, (int(rows_per_tile) // SUBGROUP) * SUBGROUP)
    tile_rows = min(rpt, pl.cdiv(rows, SUBGROUP) * SUBGROUP)   # adaptive for small inputs
    num_row_tiles = pl.cdiv(rows, tile_rows)
    rows_in_last = rows - (num_row_tiles - 1) * tile_rows
    valid_rows_last = None if rows_in_last == tile_rows else rows_in_last

    kernel = functools.partial(
        _edge_sparsity_kernel,
        threshold=float(threshold),
        valid_rows_last=valid_rows_last,
        num_row_tiles=num_row_tiles,
        use_alpha=(float(alpha) != 0.0),
        use_gamma=(float(gamma) != 0.0),
    )

    itemsize = 2 if w2d.dtype == jnp.bfloat16 else 4
    cost = pl.CostEstimate(
        flops=8 * n_main,
        transcendentals=n_main,
        bytes_accessed=itemsize * n_main + 3 * 8 * LANES * 4,
    )

    partials = pl.pallas_call(
        kernel,
        out_shape=jax.ShapeDtypeStruct((3, 8, LANES), jnp.float32),
        grid_spec=pltpu.PrefetchScalarGridSpec(
            num_scalar_prefetch=0,
            grid=(num_row_tiles,),
            in_specs=[pl.BlockSpec((tile_rows, LANES), lambda j: (j, 0))],
            out_specs=pl.BlockSpec((3, 8, LANES), lambda j: (0, 0, 0)),
        ),
        compiler_params=pltpu.CompilerParams(
            dimension_semantics=("arbitrary",),
            vmem_limit_bytes=32 * 1024 * 1024,
        ),
        cost_estimate=cost,
    )(w2d)

    # Tiny (3,8,128) buffer: reduce + apply coefficients once, in XLA.
    sums = jnp.sum(partials, axis=(1, 2))
    total = (jnp.float32(alpha) * sums[0]
             - jnp.float32(beta) * sums[1]
             + jnp.float32(gamma) * sums[2])
    return total + tail_total


def edge_sparsity_loss_ref(edge_weights, alpha=1.0, beta=1.0, gamma=5.0,
                           threshold=0.1):
    """Pure-JAX reference matching the PyTorch semantics."""
    w = jnp.asarray(edge_weights, dtype=jnp.float32).reshape(-1)
    sparsity = alpha * jnp.sum(jnp.abs(w))
    amplification = -beta * jnp.sum(jnp.log(w + 1e-6))
    penalty = gamma * jnp.sum(jnp.where(w < threshold, w * w, 0.0))
    return sparsity + amplification + penalty


if __name__ == "__main__":
    key = jax.random.PRNGKey(0)
    k1, k2, k3, k4 = jax.random.split(key, 4)

    # 1) Natural small input (1000 edge weights) -> small-n fast path.
    w1 = jax.random.uniform(k1, (1000,), dtype=jnp.float32, minval=0.005, maxval=1.0)
    loss1 = jax.block_until_ready(edge_sparsity_loss(w1))
    ref1 = edge_sparsity_loss_ref(w1)
    assert jnp.allclose(loss1, ref1, rtol=2e-4, atol=1e-2), (loss1, ref1)

    # 2) 128-aligned input, forced through the Pallas path with small tiles:
    #    exercises multiple grid steps + the masked last row-block.
    w2 = jax.random.uniform(k2, (39936,), dtype=jnp.float32, minval=0.005, maxval=1.0)
    loss2 = jax.block_until_ready(
        edge_sparsity_loss(w2, rows_per_tile=128, min_pallas_elems=0))
    ref2 = edge_sparsity_loss_ref(w2)
    assert jnp.allclose(loss2, ref2, rtol=2e-4, atol=1e-2), (loss2, ref2)

    # 3) Non-128-aligned input: exercises the jnp tail path + masked block.
    w3 = jax.random.uniform(k3, (40001,), dtype=jnp.float32, minval=0.005, maxval=1.0)
    loss3 = jax.block_until_ready(edge_sparsity_loss(w3, min_pallas_elems=0))
    ref3 = edge_sparsity_loss_ref(w3)
    assert jnp.allclose(loss3, ref3, rtol=2e-4, atol=1e-2), (loss3, ref3)

    # 4) bf16 streaming path (upcast to f32 inside the kernel).
    w4 = jax.random.uniform(k4, (20480,), dtype=jnp.float32,
                            minval=0.005, maxval=1.0).astype(jnp.bfloat16)
    loss4 = jax.block_until_ready(edge_sparsity_loss(w4, min_pallas_elems=0))
    ref4 = edge_sparsity_loss_ref(w4)
    assert jnp.allclose(loss4, ref4, rtol=1e-3, atol=1e-1), (loss4, ref4)

    print("KERNEL_OK")
</pallas_src>

<mosaic_0001>
module attributes {stable_mosaic.version = 11 : i64} {
  func.func @_edge_sparsity_kernel(%arg0: i32, %arg1: memref<128x128xf32, #tpu.memory_space<vmem>>, %arg2: memref<3x8x128xf32, #tpu.memory_space<vmem>>) attributes {dimension_semantics = [#tpu.dimension_semantics<arbitrary>], iteration_bounds = array<i64: 3>, scalar_prefetch = 0 : i64, scratch_operands = 0 : i64, tpu.core_type = #tpu.core_type<tc>, window_params = [{transform_indices = @transform_0, window_bounds = array<i64: 128, 128>}, {pipeline_mode = #tpu.pipeline_mode<synchronous>, transform_indices = @transform_1, window_bounds = array<i64: 3, 8, 128>}]} {
    %c0_i32 = arith.constant 0 : i32
    %0 = arith.cmpi eq, %arg0, %c0_i32 : i32
    %1 = arith.extui %0 : i1 to i32
    %c0_i32_0 = arith.constant 0 : i32
    %2 = arith.cmpi ne, %1, %c0_i32_0 : i32
    scf.if %2 {
      %cst = arith.constant 0.000000e+00 : f32
      %9 = vector.broadcast %cst : f32 to vector<3x8x128xf32>
      %c0 = arith.constant 0 : index
      %c0_4 = arith.constant 0 : index
      %c0_5 = arith.constant 0 : index
      %10 = vector.load %arg2[%c0, %c0_4, %c0_5] : memref<3x8x128xf32, #tpu.memory_space<vmem>>, vector<3x8x128xf32>
      tpu.vector_store %arg2[%c0, %c0_4, %c0_5], %9 {strides = array<i32>} : memref<3x8x128xf32, #tpu.memory_space<vmem>>, vector<3x8x128xf32>,
    } else {
    }
    %c2_i32 = arith.constant 2 : i32
    %3 = arith.cmpi slt, %arg0, %c2_i32 : i32
    %4 = arith.extui %3 : i1 to i32
    %c0_i32_1 = arith.constant 0 : i32
    %5 = arith.cmpi ne, %4, %c0_i32_1 : i32
    scf.if %5 {
      %c0 = arith.constant 0 : index
      %c0_4 = arith.constant 0 : index
      %9 = vector.load %arg1[%c0, %c0_4] : memref<128x128xf32, #tpu.memory_space<vmem>>, vector<128x128xf32>
      %10 = math.absf %9 : vector<128x128xf32>
      %c0_5 = arith.constant 0 : index
      %c0_6 = arith.constant 0 : index
      %c0_7 = arith.constant 0 : index
      %11 = vector.load %arg2[%c0_5, %c0_6, %c0_7] : memref<3x8x128xf32, #tpu.memory_space<vmem>>, vector<1x8x128xf32>
      %12 = vector.shape_cast %11 : vector<1x8x128xf32> to vector<8x128xf32>
      %13 = vector.shape_cast %10 : vector<128x128xf32> to vector<16x8x128xf32>
      %cst = arith.constant dense<0.000000e+00> : vector<8x128xf32>
      %14 = vector.multi_reduction <add>, %13, %cst [0] : vector<16x8x128xf32> to vector<8x128xf32>
      %15 = arith.addf %12, %14 : vector<8x128xf32>
      %c0_8 = arith.constant 0 : index
      %c0_9 = arith.constant 0 : index
      %c0_10 = arith.constant 0 : index
      %16 = vector.load %arg2[%c0_8, %c0_9, %c0_10] : memref<3x8x128xf32, #tpu.memory_space<vmem>>, vector<1x8x128xf32>
      %17 = vector.shape_cast %16 : vector<1x8x128xf32> to vector<8x128xf32>
      %18 = vector.shape_cast %15 : vector<8x128xf32> to vector<1x8x128xf32>
      tpu.vector_store %arg2[%c0_8, %c0_9, %c0_10], %18 {strides = array<i32>} : memref<3x8x128xf32, #tpu.memory_space<vmem>>, vector<1x8x128xf32>,
      %cst_11 = arith.constant 9.99999997E-7 : f32
      %19 = vector.broadcast %cst_11 : f32 to vector<128x128xf32>
      %20 = arith.addf %9, %19 : vector<128x128xf32>
      %21 = math.log %20 : vector<128x128xf32>
      %c1 = arith.constant 1 : index
      %c0_12 = arith.constant 0 : index
      %c0_13 = arith.constant 0 : index
      %22 = vector.load %arg2[%c1, %c0_12, %c0_13] : memref<3x8x128xf32, #tpu.memory_space<vmem>>, vector<1x8x128xf32>
      %23 = vector.shape_cast %22 : vector<1x8x128xf32> to vector<8x128xf32>
      %24 = vector.shape_cast %21 : vector<128x128xf32> to vector<16x8x128xf32>
      %cst_14 = arith.constant dense<0.000000e+00> : vector<8x128xf32>
      %25 = vector.multi_reduction <add>, %24, %cst_14 [0] : vector<16x8x128xf32> to vector<8x128xf32>
      %26 = arith.addf %23, %25 : vector<8x128xf32>
      %c1_15 = arith.constant 1 : index
      %c0_16 = arith.constant 0 : index
      %c0_17 = arith.constant 0 : index
      %27 = vector.load %arg2[%c1_15, %c0_16, %c0_17] : memref<3x8x128xf32, #tpu.memory_space<vmem>>, vector<1x8x128xf32>
      %28 = vector.shape_cast %27 : vector<1x8x128xf32> to vector<8x128xf32>
      %29 = vector.shape_cast %26 : vector<8x128xf32> to vector<1x8x128xf32>
      tpu.vector_store %arg2[%c1_15, %c0_16, %c0_17], %29 {strides = array<i32>} : memref<3x8x128xf32, #tpu.memory_space<vmem>>, vector<1x8x128xf32>,
      %cst_18 = arith.constant 1.000000e-01 : f32
      %30 = vector.broadcast %cst_18 : f32 to vector<128x128xf32>
      %31 = arith.cmpf olt, %9, %30 : vector<128x128xf32>
      %32 = arith.mulf %9, %9 : vector<128x128xf32>
      %cst_19 = arith.constant 0.000000e+00 : f32
      %33 = vector.broadcast %cst_19 : f32 to vector<128x128xf32>
      %34 = arith.select %31, %32, %33 : vector<128x128xi1>, vector<128x128xf32>
      %c2 = arith.constant 2 : index
      %c0_20 = arith.constant 0 : index
      %c0_21 = arith.constant 0 : index
      %35 = vector.load %arg2[%c2, %c0_20, %c0_21] : memref<3x8x128xf32, #tpu.memory_space<vmem>>, vector<1x8x128xf32>
      %36 = vector.shape_cast %35 : vector<1x8x128xf32> to vector<8x128xf32>
      %37 = vector.shape_cast %34 : vector<128x128xf32> to vector<16x8x128xf32>
      %cst_22 = arith.constant dense<0.000000e+00> : vector<8x128xf32>
      %38 = vector.multi_reduction <add>, %37, %cst_22 [0] : vector<16x8x128xf32> to vector<8x128xf32>
      %39 = arith.addf %36, %38 : vector<8x128xf32>
      %c2_23 = arith.constant 2 : index
      %c0_24 = arith.constant 0 : index
      %c0_25 = arith.constant 0 : index
      %40 = vector.load %arg2[%c2_23, %c0_24, %c0_25] : memref<3x8x128xf32, #tpu.memory_space<vmem>>, vector<1x8x128xf32>
      %41 = vector.shape_cast %40 : vector<1x8x128xf32> to vector<8x128xf32>
      %42 = vector.shape_cast %39 : vector<8x128xf32> to vector<1x8x128xf32>
      tpu.vector_store %arg2[%c2_23, %c0_24, %c0_25], %42 {strides = array<i32>} : memref<3x8x128xf32, #tpu.memory_space<vmem>>, vector<1x8x128xf32>,
    } else {
    }
    %c2_i32_2 = arith.constant 2 : i32
    %6 = arith.cmpi eq, %arg0, %c2_i32_2 : i32
    %7 = arith.extui %6 : i1 to i32
    %c0_i32_3 = arith.constant 0 : i32
    %8 = arith.cmpi ne, %7, %c0_i32_3 : i32
    scf.if %8 {
      %c0 = arith.constant 0 : index
      %c0_4 = arith.constant 0 : index
      %9 = vector.load %arg1[%c0, %c0_4] : memref<128x128xf32, #tpu.memory_space<vmem>>, vector<128x128xf32>
      %10 = tpu.iota {dimensions = array<i32: 0>} : vector<128x128xi32>
      %c56_i32 = arith.constant 56 : i32
      %11 = vector.broadcast %c56_i32 : i32 to vector<128x128xi32>
      %12 = arith.cmpi slt, %10, %11 : vector<128x128xi32>
      %13 = math.absf %9 : vector<128x128xf32>
      %cst = arith.constant 0.000000e+00 : f32
      %14 = vector.broadcast %cst : f32 to vector<128x128xf32>
      %15 = arith.select %12, %13, %14 : vector<128x128xi1>, vector<128x128xf32>
      %c0_5 = arith.constant 0 : index
      %c0_6 = arith.constant 0 : index
      %c0_7 = arith.constant 0 : index
      %16 = vector.load %arg2[%c0_5, %c0_6, %c0_7] : memref<3x8x128xf32, #tpu.memory_space<vmem>>, vector<1x8x128xf32>
      %17 = vector.shape_cast %16 : vector<1x8x128xf32> to vector<8x128xf32>
      %18 = vector.shape_cast %15 : vector<128x128xf32> to vector<16x8x128xf32>
      %cst_8 = arith.constant dense<0.000000e+00> : vector<8x128xf32>
      %19 = vector.multi_reduction <add>, %18, %cst_8 [0] : vector<16x8x128xf32> to vector<8x128xf32>
      %20 = arith.addf %17, %19 : vector<8x128xf32>
      %c0_9 = arith.constant 0 : index
      %c0_10 = arith.constant 0 : index
      %c0_11 = arith.constant 0 : index
      %21 = vector.load %arg2[%c0_9, %c0_10, %c0_11] : memref<3x8x128xf32, #tpu.memory_space<vmem>>, vector<1x8x128xf32>
      %22 = vector.shape_cast %21 : vector<1x8x128xf32> to vector<8x128xf32>
      %23 = vector.shape_cast %20 : vector<8x128xf32> to vector<1x8x128xf32>
      tpu.vector_store %arg2[%c0_9, %c0_10, %c0_11], %23 {strides = array<i32>} : memref<3x8x128xf32, #tpu.memory_space<vmem>>, vector<1x8x128xf32>,
      %cst_12 = arith.constant 9.99999997E-7 : f32
      %24 = vector.broadcast %cst_12 : f32 to vector<128x128xf32>
      %25 = arith.addf %9, %24 : vector<128x128xf32>
      %26 = math.log %25 : vector<128x128xf32>
      %cst_13 = arith.constant 0.000000e+00 : f32
      %27 = vector.broadcast %cst_13 : f32 to vector<128x128xf32>
      %28 = arith.select %12, %26, %27 : vector<128x128xi1>, vector<128x128xf32>
      %c1 = arith.constant 1 : index
      %c0_14 = arith.constant 0 : index
      %c0_15 = arith.constant 0 : index
      %29 = vector.load %arg2[%c1, %c0_14, %c0_15] : memref<3x8x128xf32, #tpu.memory_space<vmem>>, vector<1x8x128xf32>
      %30 = vector.shape_cast %29 : vector<1x8x128xf32> to vector<8x128xf32>
      %31 = vector.shape_cast %28 : vector<128x128xf32> to vector<16x8x128xf32>
      %cst_16 = arith.constant dense<0.000000e+00> : vector<8x128xf32>
      %32 = vector.multi_reduction <add>, %31, %cst_16 [0] : vector<16x8x128xf32> to vector<8x128xf32>
      %33 = arith.addf %30, %32 : vector<8x128xf32>
      %c1_17 = arith.constant 1 : index
      %c0_18 = arith.constant 0 : index
      %c0_19 = arith.constant 0 : index
      %34 = vector.load %arg2[%c1_17, %c0_18, %c0_19] : memref<3x8x128xf32, #tpu.memory_space<vmem>>, vector<1x8x128xf32>
      %35 = vector.shape_cast %34 : vector<1x8x128xf32> to vector<8x128xf32>
      %36 = vector.shape_cast %33 : vector<8x128xf32> to vector<1x8x128xf32>
      tpu.vector_store %arg2[%c1_17, %c0_18, %c0_19], %36 {strides = array<i32>} : memref<3x8x128xf32, #tpu.memory_space<vmem>>, vector<1x8x128xf32>,
      %cst_20 = arith.constant 1.000000e-01 : f32
      %37 = vector.broadcast %cst_20 : f32 to vector<128x128xf32>
      %38 = arith.cmpf olt, %9, %37 : vector<128x128xf32>
      %39 = arith.mulf %9, %9 : vector<128x128xf32>
      %cst_21 = arith.constant 0.000000e+00 : f32
      %40 = vector.broadcast %cst_21 : f32 to vector<128x128xf32>
      %41 = arith.select %38, %39, %40 : vector<128x128xi1>, vector<128x128xf32>
      %cst_22 = arith.constant 0.000000e+00 : f32
      %42 = vector.broadcast %cst_22 : f32 to vector<128x128xf32>
      %43 = arith.select %12, %41, %42 : vector<128x128xi1>, vector<128x128xf32>
      %c2 = arith.constant 2 : index
      %c0_23 = arith.constant 0 : index
      %c0_24 = arith.constant 0 : index
      %44 = vector.load %arg2[%c2, %c0_23, %c0_24] : memref<3x8x128xf32, #tpu.memory_space<vmem>>, vector<1x8x128xf32>
      %45 = vector.shape_cast %44 : vector<1x8x128xf32> to vector<8x128xf32>
      %46 = vector.shape_cast %43 : vector<128x128xf32> to vector<16x8x128xf32>
      %cst_25 = arith.constant dense<0.000000e+00> : vector<8x128xf32>
      %47 = vector.multi_reduction <add>, %46, %cst_25 [0] : vector<16x8x128xf32> to vector<8x128xf32>
      %48 = arith.addf %45, %47 : vector<8x128xf32>
      %c2_26 = arith.constant 2 : index
      %c0_27 = arith.constant 0 : index
      %c0_28 = arith.constant 0 : index
      %49 = vector.load %arg2[%c2_26, %c0_27, %c0_28] : memref<3x8x128xf32, #tpu.memory_space<vmem>>, vector<1x8x128xf32>
      %50 = vector.shape_cast %49 : vector<1x8x128xf32> to vector<8x128xf32>
      %51 = vector.shape_cast %48 : vector<8x128xf32> to vector<1x8x128xf32>
      tpu.vector_store %arg2[%c2_26, %c0_27, %c0_28], %51 {strides = array<i32>} : memref<3x8x128xf32, #tpu.memory_space<vmem>>, vector<1x8x128xf32>,
    } else {
    }
    return
  }
  func.func @transform_0(%arg0: i32) -> (i32, i32) {
    %c0_i32 = arith.constant 0 : i32
    %c0_i32_0 = arith.constant 0 : i32
    return %arg0, %c0_i32 : i32, i32
  }
  func.func @transform_1(%arg0: i32) -> (i32, i32, i32) {
    %c0_i32 = arith.constant 0 : i32
    %c0_i32_0 = arith.constant 0 : i32
    %c0_i32_1 = arith.constant 0 : i32
    %c0_i32_2 = arith.constant 0 : i32
    return %c0_i32, %c0_i32_0, %c0_i32_1 : i32, i32, i32
  }
}

</mosaic_0001>

<llo_original>
// kernel: tpu_custom_call.1
$region0: #{tpu_custom_call.1}
  #allocation0 [shape = 'u32[]', space=smem, size = 0x4, offset = 0x4, fixed_abs, tag = 'smem constant byte address 0x4 - core index']
  #allocation1 [shape = 'u32[144,128]{1,0:T(1,128)}', space=vmem, size = 0x12000, scoped, tag = 'internal scratch']
  %s0 = inlined_call_operand.hbm [shape: f32[312,128], index: 0, kind: input, shape index: {}]
  %s1 = inlined_call_operand.hbm [shape: f32[3,8,128], index: 1, kind: output, shape index: {}]
  %s2 = sld [smem:[#allocation0]]
  $region53: #{tpu_custom_call.1} parent=0
    _
  %s4 = ssub.s32 1, %s2
  %s5 = scalar_select 0, %s4, %s2
  $region1: #{tpu_custom_call.1} parent=0
    #allocation2 [shape = 'u8[131072]{0}', space=vmem, size = 0x20000, scoped, tag = 'input window, operand 0']
    #allocation3 [shape = 's32[2]{0}', space=sflag, size = 0x8, scoped, tag = 'scoped memory for tpu_custom_call.1']
    #allocation4 [shape = 's32[2]{0}', space=sflag, size = 0x8, scoped, tag = 'scoped memory for tpu_custom_call.1']
    #allocation5 [shape = 'u8[12288]{0}', space=vmem, size = 0x3000, scoped, tag = 'output window, operand 0, single buffered']
    %6 = vsyncpa [#allocation3], 0
    %s7 = scalar_lea.sflag [#allocation3], 1
    %8 = vsyncpa %s7, 0
    %9 = vsyncpa [#allocation4], 0
    loop: start=0, step=1, limit=5
    $region2: #{tpu_custom_call.1} parent=1 // loop_pre_header
      _
    $region3: #{tpu_custom_call.1} parent=1 // loop_header
      %s11 = sphi 0, %s15
      %p12 = scmp.ge.s32.totalorder %s11, 5
      %s21 = sphi 0, %s23
      %s24 = sphi 0, %s21
      %s25 = sphi 0, %s24
      %s41 = sphi 0, %s25
      %s45 = sphi 0, %s45
      %s47 = sphi 0, %s45
      %s48 = sphi 0, %s47
      %s62 = sphi 0, %s48
    $region4: #{tpu_custom_call.1} parent=1 // loop_header_branch
      %14 = sbr.rel (%p12) target = $region8
    $region5: #{tpu_custom_call.1} parent=1 // loop_body
      %s16 = ssub.s32 %s11, 1
      %s17 = ssub.s32 %s11, 2
      %s18 = sadd.s32 %s11, 1
      %s19 = ssub.s32 %s11, %s18
      %p20 = scmp.eq.s32.totalorder %s19, 0
      %s22 = sadd.s32 %s21, 1
      %s23 = scalar_select %p20, %s21, %s22
      %p26 = pneg %p20
      %p27 = scmp.eq.s32.totalorder %s11, 2
      %p28 = por %p26, %p27
      %p29 = scmp.ne.s32.totalorder %s21, %s24
      %p30 = scmp.eq.s32.totalorder %s11, 0
      %p31 = por %p29, %p30
      %p32 = scmp.ne.s32.totalorder %s21, %s24
      %p33 = scmp.eq.s32.totalorder %s16, 2
      %p34 = por %p32, %p33
      %p35 = scmp.ne.s32.totalorder %s24, %s25
      %p36 = scmp.eq.s32.totalorder %s16, 0
      %p37 = por %p35, %p36
      %p38 = scmp.ne.s32.totalorder %s24, %s25
      %p39 = scmp.eq.s32.totalorder %s17, 2
      %p40 = por %p38, %p39
      %p42 = scmp.ne.s32.totalorder %s25, %s41
      %p43 = scmp.eq.s32.totalorder %s17, 0
      %p44 = por %p42, %p43
      %s46 = sadd.s32 %s45, 1
      %p49 = scmp.eq.s32.totalorder %s11, 2
      %p50 = scmp.ne.s32.totalorder %s45, %s47
      %p51 = scmp.eq.s32.totalorder %s11, 0
      %p52 = por %p50, %p51
      %p53 = scmp.ne.s32.totalorder %s45, %s47
      %p54 = scmp.eq.s32.totalorder %s16, 2
      %p55 = por %p53, %p54
      %p56 = scmp.ne.s32.totalorder %s47, %s48
      %p57 = scmp.eq.s32.totalorder %s16, 0
      %p58 = por %p56, %p57
      %p59 = scmp.ne.s32.totalorder %s47, %s48
      %p60 = scmp.eq.s32.totalorder %s17, 2
      %p61 = por %p59, %p60
      %p63 = scmp.ne.s32.totalorder %s48, %s62
      %p64 = scmp.eq.s32.totalorder %s17, 0
      %p65 = por %p63, %p64
      %p66 = scmp.le.s32.totalorder 1, %s11
      %p67 = scmp.lt.s32.totalorder %s11, 4
      %p68 = pnand %p66, %p67
      %p69 = pneg %p68
      // Predicated region
      $region9: #{tpu_custom_call.1} parent=5 // pred_check
        _
      $region10: #{tpu_custom_call.1} parent=5 // pred_check_branch
        %71 = sbr.rel (%p68) target = $region12
      $region11: #{tpu_custom_call.1} parent=5 // pred_region
        %s72 = ssub.s32 %s11, 1
      $region12: #{tpu_custom_call.1} parent=5 // pred_fallthru
        _
      %p73 = scmp.lt.s32.totalorder %s11, 3
      // Predicated region
      $region13: #{tpu_custom_call.1} parent=5 // pred_check
        %p74 = pneg %p73
      $region14: #{tpu_custom_call.1} parent=5 // pred_check_branch
        %76 = sbr.rel (%p74) target = $region16
      $region15: #{tpu_custom_call.1} parent=5 // pred_region
        // Predicated region
        $region17: #{tpu_custom_call.1} parent=15 // pred_check
          %p77 = pneg %p31
        $region18: #{tpu_custom_call.1} parent=15 // pred_check_branch
          %79 = sbr.rel (%p77) target = $region20
        $region19: #{tpu_custom_call.1} parent=15 // pred_region
          %s80 = sand.u32 %s21, 1
          %s81 = scalar_lea.sflag [#allocation3], %s80
          %s82 = sand.u32 %s21, 1
          %s83 = smul.addr %s82, 128
          %s84 = scalar_lea.vmem [#allocation2], %s83
          %s85 = smul.u32 16, %s11
          %s86 = ssub.s32 39, %s85
          %p87 = scmp.lt.s32.totalorder %s86, 16
          %s88 = scalar_select %p87, %s86, 16
          %s89 = smul.u32 128, %s88
          %s91 = ssub.s32 2048, %s89
          %92 = vsyncadd %s81, %s91
          %p93 = scmp.ne.s32.totalorder 0, %s89
          %s94 = smul.addr %s85, 128
          %s95 = scalar_lea.hbm %s0, %s94
          %s96 = smul.u32 8, %s88
          %s97 = sshll.u32 %s84, 4
          %s98 = int_to_ptr.vmem [resolvable:$true] %s97
          %s99 = sshll.u32 %s96, 4
          %103 = dma.hbm_to_vmem [thread:$0]  (%p93), %s95, %s99, %s98, %s81, 128, 128, 8
        $region20: #{tpu_custom_call.1} parent=15 // pred_fallthru
          _
      $region16: #{tpu_custom_call.1} parent=5 // pred_fallthru
        _
      %p104 = scmp.le.s32.totalorder 1, %s11
      %p105 = scmp.lt.s32.totalorder %s11, 4
      %p106 = pnand %p104, %p105
      %p107 = pneg %p106
      // Predicated region
      $region21: #{tpu_custom_call.1} parent=5 // pred_check
        _
      $region22: #{tpu_custom_call.1} parent=5 // pred_check_branch
        %109 = sbr.rel (%p106) target = $region24
      $region23: #{tpu_custom_call.1} parent=5 // pred_region
        %s110 = ssub.s32 %s11, 1
        %s111 = sand.u32 %s24, 1
        %s112 = scalar_lea.sflag [#allocation3], %s111
        %s113 = sand.u32 %s24, 1
        %s114 = smul.addr %s113, 128
        %s115 = scalar_lea.vmem [#allocation2], %s114
        // Predicated region
        $region25: #{tpu_custom_call.1} parent=23 // pred_check
          %p116 = pneg %p37
        $region26: #{tpu_custom_call.1} parent=23 // pred_check_branch
          %118 = sbr.rel (%p116) target = $region28
        $region27: #{tpu_custom_call.1} parent=23 // pred_region
          %119 = dma.done %s112, 2048
        $region28: #{tpu_custom_call.1} parent=23 // pred_fallthru
          _
        %s120 = sand.u32 %s24, 1
        %s121 = scalar_lea.sflag [#allocation3], %s120
        %s122 = sand.u32 %s24, 1
        %s123 = smul.addr %s122, 128
        %s124 = scalar_lea.vmem [#allocation2], %s123
        %p125 = pneg %p37
        %p126 = pneg %p34
        %p127 = pneg %p58
        %p128 = pneg %p55
        %s129 = smul.u32 16, %s16
        %s130 = ssub.s32 39, %s129
        %p131 = scmp.lt.s32.totalorder %s130, 16
        %s132 = scalar_select %p131, %s130, 16
        %s133 = smul.u32 128, %s132
        %p134 = scmp.eq.s32.totalorder %s16, 0
        // Predicated region
        $region29: #{tpu_custom_call.1} parent=23 // pred_check
          %p135 = pneg %p134
        $region30: #{tpu_custom_call.1} parent=23 // pred_check_branch
          %137 = sbr.rel (%p135) target = $region32
        $region31: #{tpu_custom_call.1} parent=23 // pred_region
          %138 = vst [vmem:[#allocation5] sm:$0xff] 0.0
          %139 = vst [vmem:[#allocation5 + $0x8] sm:$0xff] 0.0
          %140 = vst [vmem:[#allocation5 + $0x10] sm:$0xff] 0.0
        $region32: #{tpu_custom_call.1} parent=23 // pred_fallthru
          _
        %p141 = scmp.lt.s32.totalorder %s16, 2
        // Predicated region
        $region33: #{tpu_custom_call.1} parent=23 // pred_check
          %p142 = pneg %p141
        $region34: #{tpu_custom_call.1} parent=23 // pred_check_branch
          %144 = sbr.rel (%p142) target = $region36
        $region35: #{tpu_custom_call.1} parent=23 // pred_region
          %v145 = vld [vmem:[%s115] sm:$0xff]
          %v146 = vld [vmem:[%s115 + $0x8] sm:$0xff]
          %v147 = vld [vmem:[%s115 + $0x10] sm:$0xff]
          %v148 = vld [vmem:[%s115 + $0x18] sm:$0xff]
          %v149 = vld [vmem:[%s115 + $0x20] sm:$0xff]
          %v150 = vld [vmem:[%s115 + $0x28] sm:$0xff]
          %v151 = vld [vmem:[%s115 + $0x30] sm:$0xff]
          %v152 = vld [vmem:[%s115 + $0x38] sm:$0xff]
          %v153 = vld [vmem:[%s115 + $0x40] sm:$0xff]
          %v154 = vld [vmem:[%s115 + $0x48] sm:$0xff]
          %v155 = vld [vmem:[%s115 + $0x50] sm:$0xff]
          %v156 = vld [vmem:[%s115 + $0x58] sm:$0xff]
          %v157 = vld [vmem:[%s115 + $0x60] sm:$0xff]
          %v158 = vld [vmem:[%s115 + $0x68] sm:$0xff]
          %v159 = vld [vmem:[%s115 + $0x70] sm:$0xff]
          %v160 = vld [vmem:[%s115 + $0x78] sm:$0xff]
          %v161 = vand.u32 2147483647, %v145
          %v162 = vand.u32 2147483647, %v146
          %v163 = vand.u32 2147483647, %v147
          %v164 = vand.u32 2147483647, %v148
          %v165 = vand.u32 2147483647, %v149
          %v166 = vand.u32 2147483647, %v150
          %v167 = vand.u32 2147483647, %v151
          %v168 = vand.u32 2147483647, %v152
          %v169 = vand.u32 2147483647, %v153
          %v170 = vand.u32 2147483647, %v154
          %v171 = vand.u32 2147483647, %v155
          %v172 = vand.u32 2147483647, %v156
          %v173 = vand.u32 2147483647, %v157
          %v174 = vand.u32 2147483647, %v158
          %v175 = vand.u32 2147483647, %v159
          %v176 = vand.u32 2147483647, %v160
          %v177 = vld [vmem:[#allocation5] sm:$0xff]
          %v178 = vadd.f32 %v161, %v162
          %v179 = vadd.f32 %v178, %v163
          %v180 = vadd.f32 %v179, %v164
          %v181 = vadd.f32 %v180, %v165
          %v182 = vadd.f32 %v181, %v166
          %v183 = vadd.f32 %v182, %v167
          %v184 = vadd.f32 %v183, %v168
          %v185 = vadd.f32 %v184, %v169
          %v186 = vadd.f32 %v185, %v170
          %v187 = vadd.f32 %v186, %v171
          %v188 = vadd.f32 %v187, %v172
          %v189 = vadd.f32 %v188, %v173
          %v190 = vadd.f32 %v189, %v174
          %v191 = vadd.f32 %v190, %v175
          %v192 = vadd.f32 %v191, %v176
          %v193 = vadd.f32 %v177, %v192
          %194 = vst [vmem:[#allocation5] sm:$0xff] %v193
          %v195 = vadd.f32 %v145, 1e-06
          %v196 = vadd.f32 %v146, 1e-06
          %v197 = vadd.f32 %v147, 1e-06
          %v198 = vadd.f32 %v148, 1e-06
          %v199 = vadd.f32 %v149, 1e-06
          %v200 = vadd.f32 %v150, 1e-06
          %v201 = vadd.f32 %v151, 1e-06
          %v202 = vadd.f32 %v152, 1e-06
          %v203 = vadd.f32 %v153, 1e-06
          %v204 = vadd.f32 %v154, 1e-06
          %v205 = vadd.f32 %v155, 1e-06
          %v206 = vadd.f32 %v156, 1e-06
          %v207 = vadd.f32 %v157, 1e-06
          %v208 = vadd.f32 %v158, 1e-06
          %v209 = vadd.f32 %v159, 1e-06
          %v210 = vadd.f32 %v160, 1e-06
          %v211 = vlog2.pop %v195
          %v212 = vmul.f32 %v211, 0.6931472
          %v213 = vlog2.pop %v196
          %v214 = vmul.f32 %v213, 0.6931472
          %v215 = vlog2.pop %v197
          %v216 = vmul.f32 %v215, 0.6931472
          %v217 = vlog2.pop %v198
          %v218 = vmul.f32 %v217, 0.6931472
          %v219 = vlog2.pop %v199
          %v220 = vmul.f32 %v219, 0.6931472
          %v221 = vlog2.pop %v200
          %v222 = vmul.f32 %v221, 0.6931472
          %v223 = vlog2.pop %v201
          %v224 = vmul.f32 %v223, 0.6931472
          %v225 = vlog2.pop %v202
          %v226 = vmul.f32 %v225, 0.6931472
          %v227 = vlog2.pop %v203
          %v228 = vmul.f32 %v227, 0.6931472
          %v229 = vlog2.pop %v204
          %v230 = vmul.f32 %v229, 0.6931472
          %v231 = vlog2.pop %v205
          %v232 = vmul.f32 %v231, 0.6931472
          %v233 = vlog2.pop %v206
          %v234 = vmul.f32 %v233, 0.6931472
          %v235 = vlog2.pop %v207
          %v236 = vmul.f32 %v235, 0.6931472
          %v237 = vlog2.pop %v208
          %v238 = vmul.f32 %v237, 0.6931472
          %v239 = vlog2.pop %v209
          %v240 = vmul.f32 %v239, 0.6931472
          %v241 = vlog2.pop %v210
          %v242 = vmul.f32 %v241, 0.6931472
          %s243 = scalar_lea.vmem [#allocation5], 8
          %v244 = vld [vmem:[%s243] sm:$0xff]
          %v245 = vadd.f32 %v212, %v214
          %v246 = vadd.f32 %v245, %v216
          %v247 = vadd.f32 %v246, %v218
          %v248 = vadd.f32 %v247, %v220
          %v249 = vadd.f32 %v248, %v222
          %v250 = vadd.f32 %v249, %v224
          %v251 = vadd.f32 %v250, %v226
          %v252 = vadd.f32 %v251, %v228
          %v253 = vadd.f32 %v252, %v230
          %v254 = vadd.f32 %v253, %v232
          %v255 = vadd.f32 %v254, %v234
          %v256 = vadd.f32 %v255, %v236
          %v257 = vadd.f32 %v256, %v238
          %v258 = vadd.f32 %v257, %v240
          %v259 = vadd.f32 %v258, %v242
          %v260 = vadd.f32 %v244, %v259
          %261 = vst [vmem:[%s243] sm:$0xff] %v260
          %vm262 = vcmp.lt.f32.partialorder %v145, 0.1
          %vm263 = vcmp.lt.f32.partialorder %v146, 0.1
          %vm264 = vcmp.lt.f32.partialorder %v147, 0.1
          %vm265 = vcmp.lt.f32.partialorder %v148, 0.1
          %vm266 = vcmp.lt.f32.partialorder %v149, 0.1
          %vm267 = vcmp.lt.f32.partialorder %v150, 0.1
          %vm268 = vcmp.lt.f32.partialorder %v151, 0.1
          %vm269 = vcmp.lt.f32.partialorder %v152, 0.1
          %vm270 = vcmp.lt.f32.partialorder %v153, 0.1
          %vm271 = vcmp.lt.f32.partialorder %v154, 0.1
          %vm272 = vcmp.lt.f32.partialorder %v155, 0.1
          %vm273 = vcmp.lt.f32.partialorder %v156, 0.1
          %vm274 = vcmp.lt.f32.partialorder %v157, 0.1
          %vm275 = vcmp.lt.f32.partialorder %v158, 0.1
          %vm276 = vcmp.lt.f32.partialorder %v159, 0.1
          %vm277 = vcmp.lt.f32.partialorder %v160, 0.1
          %v278 = vmul.f32 %v145, %v145
          %v279 = vmul.f32 %v146, %v146
          %v280 = vmul.f32 %v147, %v147
          %v281 = vmul.f32 %v148, %v148
          %v282 = vmul.f32 %v149, %v149
          %v283 = vmul.f32 %v150, %v150
          %v284 = vmul.f32 %v151, %v151
          %v285 = vmul.f32 %v152, %v152
          %v286 = vmul.f32 %v153, %v153
          %v287 = vmul.f32 %v154, %v154
          %v288 = vmul.f32 %v155, %v155
          %v289 = vmul.f32 %v156, %v156
          %v290 = vmul.f32 %v157, %v157
          %v291 = vmul.f32 %v158, %v158
          %v292 = vmul.f32 %v159, %v159
          %v293 = vmul.f32 %v160, %v160
          %v294 = vsel %vm262, %v278, 0.0
          %v295 = vsel %vm263, %v279, 0.0
          %v296 = vsel %vm264, %v280, 0.0
          %v297 = vsel %vm265, %v281, 0.0
          %v298 = vsel %vm266, %v282, 0.0
          %v299 = vsel %vm267, %v283, 0.0
          %v300 = vsel %vm268, %v284, 0.0
          %v301 = vsel %vm269, %v285, 0.0
          %v302 = vsel %vm270, %v286, 0.0
          %v303 = vsel %vm271, %v287, 0.0
          %v304 = vsel %vm272, %v288, 0.0
          %v305 = vsel %vm273, %v289, 0.0
          %v306 = vsel %vm274, %v290, 0.0
          %v307 = vsel %vm275, %v291, 0.0
          %v308 = vsel %vm276, %v292, 0.0
          %v309 = vsel %vm277, %v293, 0.0
          %s310 = scalar_lea.vmem [#allocation5], 16
          %v311 = vld [vmem:[%s310] sm:$0xff]
          %v312 = vadd.f32 %v294, %v295
          %v313 = vadd.f32 %v312, %v296
          %v314 = vadd.f32 %v313, %v297
          %v315 = vadd.f32 %v314, %v298
          %v316 = vadd.f32 %v315, %v299
          %v317 = vadd.f32 %v316, %v300
          %v318 = vadd.f32 %v317, %v301
          %v319 = vadd.f32 %v318, %v302
          %v320 = vadd.f32 %v319, %v303
          %v321 = vadd.f32 %v320, %v304
          %v322 = vadd.f32 %v321, %v305
          %v323 = vadd.f32 %v322, %v306
          %v324 = vadd.f32 %v323, %v307
          %v325 = vadd.f32 %v324, %v308
          %v326 = vadd.f32 %v325, %v309
          %v327 = vadd.f32 %v311, %v326
          %328 = vst [vmem:[%s310] sm:$0xff] %v327
        $region36: #{tpu_custom_call.1} parent=23 // pred_fallthru
          _
        %p329 = scmp.eq.s32.totalorder %s16, 2
        // Predicated region
        $region37: #{tpu_custom_call.1} parent=23 // pred_check
          %p330 = pneg %p329
        $region38: #{tpu_custom_call.1} parent=23 // pred_check_branch
          %332 = sbr.rel (%p330) target = $region40
        $region39: #{tpu_custom_call.1} parent=23 // pred_region
          %v333 = vld [vmem:[%s115] sm:$0xff]
          %v334 = vld [vmem:[%s115 + $0x8] sm:$0xff]
          %v335 = vld [vmem:[%s115 + $0x10] sm:$0xff]
          %v336 = vld [vmem:[%s115 + $0x18] sm:$0xff]
          %v337 = vld [vmem:[%s115 + $0x20] sm:$0xff]
          %v338 = vld [vmem:[%s115 + $0x28] sm:$0xff]
          %v339 = vld [vmem:[%s115 + $0x30] sm:$0xff]
          %v340 = vld [vmem:[%s115 + $0x38] sm:$0xff]
          %v341 = vld [vmem:[%s115 + $0x40] sm:$0xff]
          %v342 = vld [vmem:[%s115 + $0x48] sm:$0xff]
          %v343 = vld [vmem:[%s115 + $0x50] sm:$0xff]
          %v344 = vld [vmem:[%s115 + $0x58] sm:$0xff]
          %v345 = vld [vmem:[%s115 + $0x60] sm:$0xff]
          %v346 = vld [vmem:[%s115 + $0x68] sm:$0xff]
          %v347 = vld [vmem:[%s115 + $0x70] sm:$0xff]
          %v348 = vld [vmem:[%s115 + $0x78] sm:$0xff]
          %v349 = vlaneseq
          %v350 = vshrl.u32 %v349, 7
          %v351 = vadd.s32 %v350, 8
          %v352 = vadd.s32 %v350, 16
          %v353 = vadd.s32 %v350, 24
          %v354 = vadd.s32 %v350, 32
          %v355 = vadd.s32 %v350, 40
          %v356 = vadd.s32 %v350, 48
          %v357 = vadd.s32 %v350, 56
          %v358 = vadd.s32 %v350, 64
          %v359 = vadd.s32 %v350, 72
          %v360 = vadd.s32 %v350, 80
          %v361 = vadd.s32 %v350, 88
          %v362 = vadd.s32 %v350, 96
          %v363 = vadd.s32 %v350, 104
          %v364 = vadd.s32 %v350, 112
          %v365 = vadd.s32 %v350, 120
          %vm366 = vcmp.lt.s32.totalorder %v350, 56
          %vm367 = vcmp.lt.s32.totalorder %v351, 56
          %vm368 = vcmp.lt.s32.totalorder %v352, 56
          %vm369 = vcmp.lt.s32.totalorder %v353, 56
          %vm370 = vcmp.lt.s32.totalorder %v354, 56
          %vm371 = vcmp.lt.s32.totalorder %v355, 56
          %vm372 = vcmp.lt.s32.totalorder %v356, 56
          %vm373 = vcmp.lt.s32.totalorder %v357, 56
          %vm374 = vcmp.lt.s32.totalorder %v358, 56
          %vm375 = vcmp.lt.s32.totalorder %v359, 56
          %vm376 = vcmp.lt.s32.totalorder %v360, 56
          %vm377 = vcmp.lt.s32.totalorder %v361, 56
          %vm378 = vcmp.lt.s32.totalorder %v362, 56
          %vm379 = vcmp.lt.s32.totalorder %v363, 56
          %vm380 = vcmp.lt.s32.totalorder %v364, 56
          %vm381 = vcmp.lt.s32.totalorder %v365, 56
          %v382 = vand.u32 2147483647, %v333
          %v383 = vand.u32 2147483647, %v334
          %v384 = vand.u32 2147483647, %v335
          %v385 = vand.u32 2147483647, %v336
          %v386 = vand.u32 2147483647, %v337
          %v387 = vand.u32 2147483647, %v338
          %v388 = vand.u32 2147483647, %v339
          %v389 = vand.u32 2147483647, %v340
          %v390 = vand.u32 2147483647, %v341
          %v391 = vand.u32 2147483647, %v342
          %v392 = vand.u32 2147483647, %v343
          %v393 = vand.u32 2147483647, %v344
          %v394 = vand.u32 2147483647, %v345
          %v395 = vand.u32 2147483647, %v346
          %v396 = vand.u32 2147483647, %v347
          %v397 = vand.u32 2147483647, %v348
          %v398 = vsel %vm366, %v382, 0.0
          %v399 = vsel %vm367, %v383, 0.0
          %v400 = vsel %vm368, %v384, 0.0
          %v401 = vsel %vm369, %v385, 0.0
          %v402 = vsel %vm370, %v386, 0.0
          %v403 = vsel %vm371, %v387, 0.0
          %v404 = vsel %vm372, %v388, 0.0
          %v405 = vsel %vm373, %v389, 0.0
          %v406 = vsel %vm374, %v390, 0.0
          %v407 = vsel %vm375, %v391, 0.0
          %v408 = vsel %vm376, %v392, 0.0
          %v409 = vsel %vm377, %v393, 0.0
          %v410 = vsel %vm378, %v394, 0.0
          %v411 = vsel %vm379, %v395, 0.0
          %v412 = vsel %vm380, %v396, 0.0
          %v413 = vsel %vm381, %v397, 0.0
          %v414 = vld [vmem:[#allocation5] sm:$0xff]
          %v415 = vadd.f32 %v398, %v399
          %v416 = vadd.f32 %v415, %v400
          %v417 = vadd.f32 %v416, %v401
          %v418 = vadd.f32 %v417, %v402
          %v419 = vadd.f32 %v418, %v403
          %v420 = vadd.f32 %v419, %v404
          %v421 = vadd.f32 %v420, %v405
          %v422 = vadd.f32 %v421, %v406
          %v423 = vadd.f32 %v422, %v407
          %v424 = vadd.f32 %v423, %v408
          %v425 = vadd.f32 %v424, %v409
          %v426 = vadd.f32 %v425, %v410
          %v427 = vadd.f32 %v426, %v411
          %v428 = vadd.f32 %v427, %v412
          %v429 = vadd.f32 %v428, %v413
          %v430 = vadd.f32 %v414, %v429
          %431 = vst [vmem:[#allocation5] sm:$0xff] %v430
          %v432 = vadd.f32 %v333, 1e-06
          %v433 = vadd.f32 %v334, 1e-06
          %v434 = vadd.f32 %v335, 1e-06
          %v435 = vadd.f32 %v336, 1e-06
          %v436 = vadd.f32 %v337, 1e-06
          %v437 = vadd.f32 %v338, 1e-06
          %v438 = vadd.f32 %v339, 1e-06
          %v439 = vadd.f32 %v340, 1e-06
          %v440 = vadd.f32 %v341, 1e-06
          %v441 = vadd.f32 %v342, 1e-06
          %v442 = vadd.f32 %v343, 1e-06
          %v443 = vadd.f32 %v344, 1e-06
          %v444 = vadd.f32 %v345, 1e-06
          %v445 = vadd.f32 %v346, 1e-06
          %v446 = vadd.f32 %v347, 1e-06
          %v447 = vadd.f32 %v348, 1e-06
          %v448 = vlog2.pop %v432
          %v449 = vmul.f32 %v448, 0.6931472
          %v450 = vlog2.pop %v433
          %v451 = vmul.f32 %v450, 0.6931472
          %v452 = vlog2.pop %v434
          %v453 = vmul.f32 %v452, 0.6931472
          %v454 = vlog2.pop %v435
          %v455 = vmul.f32 %v454, 0.6931472
          %v456 = vlog2.pop %v436
          %v457 = vmul.f32 %v456, 0.6931472
          %v458 = vlog2.pop %v437
          %v459 = vmul.f32 %v458, 0.6931472
          %v460 = vlog2.pop %v438
          %v461 = vmul.f32 %v460, 0.6931472
          %v462 = vlog2.pop %v439
          %v463 = vmul.f32 %v462, 0.6931472
          %v464 = vlog2.pop %v440
          %v465 = vmul.f32 %v464, 0.6931472
          %v466 = vlog2.pop %v441
          %v467 = vmul.f32 %v466, 0.6931472
          %v468 = vlog2.pop %v442
          %v469 = vmul.f32 %v468, 0.6931472
          %v470 = vlog2.pop %v443
          %v471 = vmul.f32 %v470, 0.6931472
          %v472 = vlog2.pop %v444
          %v473 = vmul.f32 %v472, 0.6931472
          %v474 = vlog2.pop %v445
          %v475 = vmul.f32 %v474, 0.6931472
          %v476 = vlog2.pop %v446
          %v477 = vmul.f32 %v476, 0.6931472
          %v478 = vlog2.pop %v447
          %v479 = vmul.f32 %v478, 0.6931472
          %v480 = vsel %vm366, %v449, 0.0
          %v481 = vsel %vm367, %v451, 0.0
          %v482 = vsel %vm368, %v453, 0.0
          %v483 = vsel %vm369, %v455, 0.0
          %v484 = vsel %vm370, %v457, 0.0
          %v485 = vsel %vm371, %v459, 0.0
          %v486 = vsel %vm372, %v461, 0.0
          %v487 = vsel %vm373, %v463, 0.0
          %v488 = vsel %vm374, %v465, 0.0
          %v489 = vsel %vm375, %v467, 0.0
          %v490 = vsel %vm376, %v469, 0.0
          %v491 = vsel %vm377, %v471, 0.0
          %v492 = vsel %vm378, %v473, 0.0
          %v493 = vsel %vm379, %v475, 0.0
          %v494 = vsel %vm380, %v477, 0.0
          %v495 = vsel %vm381, %v479, 0.0
          %s496 = scalar_lea.vmem [#allocation5], 8
          %v497 = vld [vmem:[%s496] sm:$0xff]
          %v498 = vadd.f32 %v480, %v481
          %v499 = vadd.f32 %v498, %v482
          %v500 = vadd.f32 %v499, %v483
          %v501 = vadd.f32 %v500, %v484
          %v502 = vadd.f32 %v501, %v485
          %v503 = vadd.f32 %v502, %v486
          %v504 = vadd.f32 %v503, %v487
          %v505 = vadd.f32 %v504, %v488
          %v506 = vadd.f32 %v505, %v489
          %v507 = vadd.f32 %v506, %v490
          %v508 = vadd.f32 %v507, %v491
          %v509 = vadd.f32 %v508, %v492
          %v510 = vadd.f32 %v509, %v493
          %v511 = vadd.f32 %v510, %v494
          %v512 = vadd.f32 %v511, %v495
          %v513 = vadd.f32 %v497, %v512
          %514 = vst [vmem:[%s496] sm:$0xff] %v513
          %vm515 = vcmp.lt.f32.partialorder %v333, 0.1
          %vm516 = vcmp.lt.f32.partialorder %v334, 0.1
          %vm517 = vcmp.lt.f32.partialorder %v335, 0.1
          %vm518 = vcmp.lt.f32.partialorder %v336, 0.1
          %vm519 = vcmp.lt.f32.partialorder %v337, 0.1
          %vm520 = vcmp.lt.f32.partialorder %v338, 0.1
          %vm521 = vcmp.lt.f32.partialorder %v339, 0.1
          %vm522 = vcmp.lt.f32.partialorder %v340, 0.1
          %vm523 = vcmp.lt.f32.partialorder %v341, 0.1
          %vm524 = vcmp.lt.f32.partialorder %v342, 0.1
          %vm525 = vcmp.lt.f32.partialorder %v343, 0.1
          %vm526 = vcmp.lt.f32.partialorder %v344, 0.1
          %vm527 = vcmp.lt.f32.partialorder %v345, 0.1
          %vm528 = vcmp.lt.f32.partialorder %v346, 0.1
          %vm529 = vcmp.lt.f32.partialorder %v347, 0.1
          %vm530 = vcmp.lt.f32.partialorder %v348, 0.1
          %v531 = vmul.f32 %v333, %v333
          %v532 = vmul.f32 %v334, %v334
          %v533 = vmul.f32 %v335, %v335
          %v534 = vmul.f32 %v336, %v336
          %v535 = vmul.f32 %v337, %v337
          %v536 = vmul.f32 %v338, %v338
          %v537 = vmul.f32 %v339, %v339
          %v538 = vmul.f32 %v340, %v340
          %v539 = vmul.f32 %v341, %v341
          %v540 = vmul.f32 %v342, %v342
          %v541 = vmul.f32 %v343, %v343
          %v542 = vmul.f32 %v344, %v344
          %v543 = vmul.f32 %v345, %v345
          %v544 = vmul.f32 %v346, %v346
          %v545 = vmul.f32 %v347, %v347
          %v546 = vmul.f32 %v348, %v348
          %v547 = vsel %vm515, %v531, 0.0
          %v548 = vsel %vm516, %v532, 0.0
          %v549 = vsel %vm517, %v533, 0.0
          %v550 = vsel %vm518, %v534, 0.0
          %v551 = vsel %vm519, %v535, 0.0
          %v552 = vsel %vm520, %v536, 0.0
          %v553 = vsel %vm521, %v537, 0.0
          %v554 = vsel %vm522, %v538, 0.0
          %v555 = vsel %vm523, %v539, 0.0
          %v556 = vsel %vm524, %v540, 0.0
          %v557 = vsel %vm525, %v541, 0.0
          %v558 = vsel %vm526, %v542, 0.0
          %v559 = vsel %vm527, %v543, 0.0
          %v560 = vsel %vm528, %v544, 0.0
          %v561 = vsel %vm529, %v545, 0.0
          %v562 = vsel %vm530, %v546, 0.0
          %v563 = vsel %vm366, %v547, 0.0
          %v564 = vsel %vm367, %v548, 0.0
          %v565 = vsel %vm368, %v549, 0.0
          %v566 = vsel %vm369, %v550, 0.0
          %v567 = vsel %vm370, %v551, 0.0
          %v568 = vsel %vm371, %v552, 0.0
          %v569 = vsel %vm372, %v553, 0.0
          %v570 = vsel %vm373, %v554, 0.0
          %v571 = vsel %vm374, %v555, 0.0
          %v572 = vsel %vm375, %v556, 0.0
          %v573 = vsel %vm376, %v557, 0.0
          %v574 = vsel %vm377, %v558, 0.0
          %v575 = vsel %vm378, %v559, 0.0
          %v576 = vsel %vm379, %v560, 0.0
          %v577 = vsel %vm380, %v561, 0.0
          %v578 = vsel %vm381, %v562, 0.0
          %s579 = scalar_lea.vmem [#allocation5], 16
          %v580 = vld [vmem:[%s579] sm:$0xff]
          %v581 = vadd.f32 %v563, %v564
          %v582 = vadd.f32 %v581, %v565
          %v583 = vadd.f32 %v582, %v566
          %v584 = vadd.f32 %v583, %v567
          %v585 = vadd.f32 %v584, %v568
          %v586 = vadd.f32 %v585, %v569
          %v587 = vadd.f32 %v586, %v570
          %v588 = vadd.f32 %v587, %v571
          %v589 = vadd.f32 %v588, %v572
          %v590 = vadd.f32 %v589, %v573
          %v591 = vadd.f32 %v590, %v574
          %v592 = vadd.f32 %v591, %v575
          %v593 = vadd.f32 %v592, %v576
          %v594 = vadd.f32 %v593, %v577
          %v595 = vadd.f32 %v594, %v578
          %v596 = vadd.f32 %v580, %v595
          %597 = vst [vmem:[%s579] sm:$0xff] %v596
        $region40: #{tpu_custom_call.1} parent=23 // pred_fallthru
          _
        // Predicated region
        $region41: #{tpu_custom_call.1} parent=23 // pred_check
          %p598 = pneg %p55
        $region42: #{tpu_custom_call.1} parent=23 // pred_check_branch
          %600 = sbr.rel (%p598) target = $region44
        $region43: #{tpu_custom_call.1} parent=23 // pred_region
          %s602 = ssub.s32 384, 384
          %603 = vsyncadd [#allocation4], %s602
          %s604 = sshll.u32 [#allocation5], 4
          %s605 = int_to_ptr.vmem [resolvable:$true] %s604
          %610 = dma.vmem_to_hbm [thread:$0]  %s605, 384, %s1, [#allocation4], 128, 128, 8
        $region44: #{tpu_custom_call.1} parent=23 // pred_fallthru
          _
        // Predicated region
        $region45: #{tpu_custom_call.1} parent=23 // pred_check
          %p611 = pneg %p55
        $region46: #{tpu_custom_call.1} parent=23 // pred_check_branch
          %613 = sbr.rel (%p611) target = $region48
        $region47: #{tpu_custom_call.1} parent=23 // pred_region
          %614 = dma.done [#allocation4], 384
        $region48: #{tpu_custom_call.1} parent=23 // pred_fallthru
          _
      $region24: #{tpu_custom_call.1} parent=5 // pred_fallthru
        _
      %p615 = scmp.le.s32.totalorder 2, %s11
      // Predicated region
      $region49: #{tpu_custom_call.1} parent=5 // pred_check
        %p616 = pneg %p615
      $region50: #{tpu_custom_call.1} parent=5 // pred_check_branch
        %618 = sbr.rel (%p616) target = $region52
      $region51: #{tpu_custom_call.1} parent=5 // pred_region
        %s619 = ssub.s32 %s11, 2
      $region52: #{tpu_custom_call.1} parent=5 // pred_fallthru
        _
    $region6: #{tpu_custom_call.1} parent=1 // loop_footer
      %s15 = sadd.s32 1, %s11
    $region7: #{tpu_custom_call.1} parent=1 // loop_footer_branch
      %10 = sbr.rel target = $region3
    $region8: #{tpu_custom_call.1} parent=1 // loop_exit
      _
    %620 = vsyncpa [#allocation3], 1
    %s621 = scalar_lea.sflag [#allocation3], 1
    %622 = vsyncpa %s621, 1
    %623 = vsyncpa [#allocation4], 1
    %s624 = scalar_lea.sflag [#allocation4], 1
    %625 = vsyncpa %s624, 1

</llo_original>
